<compile_context>
chip_gen: v7x
topology: tpu7x:2x2x1
jax: 0.10.0
libtpu: 0.0.40
codegen_flags: <defaults>
</compile_context>

<pallas_src>
import functools

import jax
import jax.numpy as jnp
from jax.experimental import pallas as pl
from jax.experimental.pallas import tpu as pltpu


def _info_proto_kernel(xm_ref, logits_ref, proto_ref,
                       newproto_ref, maxcls_ref,
                       local_acc, count_acc, *, n_valid):
    """One ROI tile per grid step; prototype update finalized on the last step.

    xm_ref:       (TN, C)  pooled ROI features (ROIs on sublanes, channels on lanes)
    logits_ref:   (NC, TN) class logits transposed (ROIs on lanes)
    proto_ref:    (NC, C)  current prototypes (resident across the grid)
    newproto_ref: (NC, C)  updated prototypes (aliased with proto input, written last step)
    maxcls_ref:   (1, TN)  per-ROI argmax class, lane-dense
    local_acc:    (NC, C)  VMEM accumulator of per-class feature sums
    count_acc:    (NC, 1)  VMEM accumulator of per-class ROI counts
    """
    i = pl.program_id(0)
    n_steps = pl.num_programs(0)

    @pl.when(i == 0)
    def _init():
        local_acc[...] = jnp.zeros_like(local_acc)
        count_acc[...] = jnp.zeros_like(count_acc)

    logits_t = logits_ref[...]                       # (NC, TN)
    n_cls, tn = logits_t.shape                       # static python ints
    xm = xm_ref[...]                                 # (TN, C)

    # argmax over classes (== argmax of softmax); first maximal index on ties,
    # matching jnp.argmax (torch.argmax tie order is backend-dependent).
    cls_iota = jax.lax.broadcasted_iota(jnp.int32, (n_cls, tn), 0)   # reused below
    col_max = jnp.max(logits_t, axis=0, keepdims=True)               # (1, TN)
    max_cls = jnp.min(jnp.where(logits_t == col_max, cls_iota, n_cls),
                      axis=0, keepdims=True)                         # (1, TN) int32
    maxcls_ref[...] = max_cls

    # one-hot scatter matrix (classes x ROIs); reuse cls_iota from the argmax above.
    onehot = (cls_iota == max_cls).astype(jnp.float32)               # (NC, TN)

    def _accumulate(oh):
        # per-class feature sums: one small MXU matmul; counts: XLU lane reduce
        # (XLU slot has slack next to the tiny MXU push -- keep it there).
        local_acc[...] += jnp.dot(oh, xm, preferred_element_type=jnp.float32)
        count_acc[...] += jnp.sum(oh, axis=1, keepdims=True)

    if n_valid % tn:                       # static: the last tile is ragged
        last = n_steps - 1

        @pl.when(i != last)
        def _full_tile():                  # full tiles: no masking work at all
            _accumulate(onehot)

        @pl.when(i == last)
        def _ragged_tile():                # only the last tile pays for the mask
            lane = jax.lax.broadcasted_iota(jnp.int32, (1, tn), 1)
            valid = (i * tn + lane) < n_valid
            _accumulate(onehot * valid.astype(jnp.float32))
    else:
        _accumulate(onehot)

    @pl.when(i == n_steps - 1)
    def _finalize():
        proto = proto_ref[...]                                       # (NC, C)
        count = count_acc[...]
        exist = count > 0.0
        local_mean = local_acc[...] / jnp.where(exist, count, 1.0)
        # cosine similarity with eps on the norm product (doc formula of
        # torch.cosine_similarity); matches the reference. NOTE: diverges from
        # per-norm clamping only for near-zero vectors.
        dot_ab = jnp.sum(proto * local_mean, axis=1, keepdims=True)
        norm_a = jnp.sqrt(jnp.sum(proto * proto, axis=1, keepdims=True))
        norm_b = jnp.sqrt(jnp.sum(local_mean * local_mean, axis=1, keepdims=True))
        cos = dot_ab / jnp.maximum(norm_a * norm_b, 1e-8)
        updated = proto * cos + local_mean * (1.0 - cos)
        newproto_ref[...] = jnp.where(exist, updated, proto)


def _round_up(v, m):
    return -(-v // m) * m


def _pick_roi_tile(n, c, roi_tile):
    """Pick the ROI tile size (lane/MXU-friendly, VMEM-budgeted)."""
    if roi_tile is None:
        # Cap the double-buffered (tn, C) f32 feature tile at ~8 MiB so the whole
        # kernel stays inside v5e's 16 MiB scoped VMEM (with the limit raised) and
        # leaves ample headroom on v7x's 64 MiB physical VMEM.  Keep tn a multiple
        # of 256 so the matmul contraction dim fills the 256-wide MXU on v6e/v7x.
        cap = (8 << 20) // (2 * c * 4)
        roi_tile = max(256, min(2048, (cap // 256) * 256)) if cap >= 256 else 128
    assert roi_tile % 128 == 0, "roi_tile must be a multiple of 128"
    if n <= roi_tile:
        # Single grid step; still pad ROIs up to a multiple of 128 so logits^T and
        # the (1, N) max_cls output are lane-dense (unmasked vld/vst) and the xm
        # sublane dim is 8-aligned.  The in-kernel validity mask handles padding.
        return _round_up(max(n, 1), 128)
    return roi_tile


def information_prototype_forward(x, class_logits, prototypes, step, *, roi_tile=None):
    """x: (N, C, 7, 7) NCHW; class_logits: (N, NUM_CLASSES); prototypes: (NUM_CLASSES, C)."""
    N, C, H, W = x.shape
    NC, D = prototypes.shape
    assert D == C, "prototype feature dim must equal channel dim"
    assert class_logits.shape == (N, NC)
    assert H == 7 and W == 7, "AvgPool2d(7,7).squeeze() path assumes a 7x7 feature map"

    # ---- wrapper-side glue (plain XLA) -------------------------------------------------
    # AvgPool2d(kernel=7, stride=7) on a 7x7 map == mean over the spatial axes.  Pooling
    # here means the kernel only DMAs (N, C) instead of the 49x larger feature map, and
    # the NCHW transpose copy disappears.  The logits transpose is tiny and makes the
    # ROI axis lane-dense inside the kernel.
    x_mapped = jnp.mean(x.astype(jnp.float32), axis=(2, 3))           # (N, C)
    logits_t = class_logits.astype(jnp.float32).T                      # (NC, N)

    # ---- ROI tiling ---------------------------------------------------------------------
    tn = _pick_roi_tile(N, C, roi_tile)
    n_pad = (-N) % tn
    n_total = N + n_pad
    grid = (n_total // tn,)

    if n_pad:
        # Write into pre-sized buffers (dynamic-update-slice fuses with the producers)
        # instead of jnp.pad materialising a second HBM copy of the pooled features.
        x_mapped_p = jnp.zeros((n_total, C), jnp.float32).at[:N, :].set(x_mapped)
        logits_t_p = jnp.zeros((NC, n_total), jnp.float32).at[:, :N].set(logits_t)
    else:
        x_mapped_p, logits_t_p = x_mapped, logits_t

    kernel = functools.partial(_info_proto_kernel, n_valid=N)

    # VMEM budget: double-buffered inputs/outputs + resident prototypes + accumulators,
    # with 2x headroom.  Raises v5e's 16 MiB scoped default; capped well below v7x's
    # 64 MiB physical VMEM so the 2-deep pipeline stays intact.
    vmem_est = 4 * (2 * tn * C            # xm tile, double-buffered
                    + 2 * NC * tn         # logits^T tile, double-buffered
                    + 4 * NC * C          # prototypes in + out
                    + 2 * tn              # max_cls out
                    + NC * C + NC)        # accumulators
    vmem_limit = int(min(max(32 << 20, 2 * vmem_est), 48 << 20))

    new_proto, max_cls_2d = pl.pallas_call(
        kernel,
        grid=grid,
        in_specs=[
            pl.BlockSpec((tn, C), lambda i: (i, 0)),      # pooled features tile
            pl.BlockSpec((NC, tn), lambda i: (0, i)),     # logits^T tile (ROIs on lanes)
            pl.BlockSpec((NC, C), lambda i: (0, 0)),      # prototypes (resident)
        ],
        out_specs=(
            pl.BlockSpec((NC, C), lambda i: (0, 0)),      # updated prototypes
            pl.BlockSpec((1, tn), lambda i: (0, i)),      # per-ROI argmax, lane-dense
        ),
        out_shape=(
            jax.ShapeDtypeStruct((NC, C), jnp.float32),
            jax.ShapeDtypeStruct((1, n_total), jnp.int32),
        ),
        scratch_shapes=[
            pltpu.VMEM((NC, C), jnp.float32),             # per-class feature-sum acc
            pltpu.VMEM((NC, 1), jnp.float32),             # per-class count acc
        ],
        input_output_aliases={2: 0},                      # prototypes updated in place
        compiler_params=pltpu.CompilerParams(
            dimension_semantics=("arbitrary",),           # ROI axis is a reduction
            vmem_limit_bytes=vmem_limit),
    )(x_mapped_p, logits_t_p, prototypes.astype(jnp.float32))

    max_cls = max_cls_2d[0, :N]
    # step is untouched by the 'cos' update branch; x_mapped returned in x's dtype.
    return new_proto, step, x, class_logits, max_cls, x_mapped.astype(x.dtype)


def _reference_forward(x, class_logits, prototypes, step):
    """Pure-JAX reference mirroring the PyTorch module ('cos' update)."""
    N, C, H, W = x.shape
    NC = class_logits.shape[1]
    p = jax.nn.softmax(class_logits, axis=1)
    max_cls = jnp.argmax(p, axis=1)
    x_mapped = jnp.mean(x.reshape(N, C, H * W), axis=2)              # (N, C)

    onehot = jax.nn.one_hot(max_cls, NC, dtype=jnp.float32)          # (N, NC)
    local = onehot.T @ x_mapped                                      # (NC, C)
    count = jnp.sum(onehot, axis=0)[:, None]                         # (NC, 1)
    exist = count > 0
    local_mean = local / jnp.where(exist, count, 1.0)
    dot_ab = jnp.sum(prototypes * local_mean, axis=1, keepdims=True)
    norm_a = jnp.sqrt(jnp.sum(prototypes ** 2, axis=1, keepdims=True))
    norm_b = jnp.sqrt(jnp.sum(local_mean ** 2, axis=1, keepdims=True))
    cos = dot_ab / jnp.maximum(norm_a * norm_b, 1e-8)
    new_proto = jnp.where(exist, prototypes * cos + local_mean * (1.0 - cos), prototypes)
    return new_proto, step, x, class_logits, max_cls, x_mapped


def _check(out, ref):
    assert jnp.allclose(out[0], ref[0], rtol=1e-3, atol=1e-3), "prototypes mismatch"
    assert jnp.all(out[4].astype(jnp.int32) == ref[4].astype(jnp.int32)), "max_cls mismatch"
    assert jnp.allclose(out[5].astype(jnp.float32), ref[5], rtol=1e-3, atol=1e-3), \
        "x_mapped mismatch"


if __name__ == "__main__":
    H, W = 7, 7
    NUM_CLASSES = 21

    # --- Test 1: small N, single (padded, ragged) tile; zero + random prototypes -------
    N, C = 8, 256
    key = jax.random.PRNGKey(0)
    k1, k2, k3 = jax.random.split(key, 3)
    x = jax.random.normal(k1, (N, C, H, W), dtype=jnp.float32)
    class_logits = jax.random.normal(k2, (N, NUM_CLASSES), dtype=jnp.float32)
    step = jnp.zeros((NUM_CLASSES,), dtype=jnp.int32)
    prototypes_zero = jnp.zeros((NUM_CLASSES, C), dtype=jnp.float32)          # as in __init__
    prototypes_rand = jax.random.normal(k3, (NUM_CLASSES, C), dtype=jnp.float32)

    for protos in (prototypes_zero, prototypes_rand):
        out = jax.block_until_ready(
            information_prototype_forward(x, class_logits, protos, step))
        ref = _reference_forward(x, class_logits, protos, step)
        _check(out, ref)

    # --- Test 2: multi-tile grid with ragged last tile (full + masked branches) ---------
    N2, C2 = 300, 128
    kk = jax.random.split(jax.random.PRNGKey(1), 3)
    x2 = jax.random.normal(kk[0], (N2, C2, H, W), dtype=jnp.float32)
    logits2 = jax.random.normal(kk[1], (N2, NUM_CLASSES), dtype=jnp.float32)
    protos2 = jax.random.normal(kk[2], (NUM_CLASSES, C2), dtype=jnp.float32)
    out2 = jax.block_until_ready(
        information_prototype_forward(x2, logits2, protos2, step, roi_tile=256))
    ref2 = _reference_forward(x2, logits2, protos2, step)
    _check(out2, ref2)

    # --- Test 3: multi-tile grid with no padding (unmasked accumulation path) -----------
    N3, C3 = 256, 128
    kj = jax.random.split(jax.random.PRNGKey(2), 3)
    x3 = jax.random.normal(kj[0], (N3, C3, H, W), dtype=jnp.float32)
    logits3 = jax.random.normal(kj[1], (N3, NUM_CLASSES), dtype=jnp.float32)
    protos3 = jax.random.normal(kj[2], (NUM_CLASSES, C3), dtype=jnp.float32)
    out3 = jax.block_until_ready(
        information_prototype_forward(x3, logits3, protos3, step, roi_tile=128))
    ref3 = _reference_forward(x3, logits3, protos3, step)
    _check(out3, ref3)

    print("KERNEL_OK")
</pallas_src>

<mosaic_0001>
module attributes {stable_mosaic.version = 11 : i64} {
  func.func @_info_proto_kernel(%arg0: i32, %arg1: memref<128x256xf32, #tpu.memory_space<vmem>>, %arg2: memref<21x128xf32, #tpu.memory_space<vmem>>, %arg3: memref<21x256xf32, #tpu.memory_space<vmem>>, %arg4: memref<21x256xf32, #tpu.memory_space<vmem>>, %arg5: memref<1x128xi32, #tpu.memory_space<vmem>>, %arg6: memref<21x256xf32, #tpu.memory_space<vmem>>, %arg7: memref<21x1xf32, #tpu.memory_space<vmem>>) attributes {dimension_semantics = [#tpu.dimension_semantics<arbitrary>], iteration_bounds = array<i64: 1>, scalar_prefetch = 0 : i64, scratch_operands = 2 : i64, tpu.core_type = #tpu.core_type<tc>, window_params = [{transform_indices = @transform_0, window_bounds = array<i64: 128, 256>}, {transform_indices = @transform_1, window_bounds = array<i64: 21, 128>}, {pipeline_mode = #tpu.pipeline_mode<synchronous>, transform_indices = @transform_2, window_bounds = array<i64: 21, 256>}, {pipeline_mode = #tpu.pipeline_mode<synchronous>, transform_indices = @transform_3, window_bounds = array<i64: 21, 256>}, {transform_indices = @transform_4, window_bounds = array<i64: 1, 128>}]} {
    %c0_i32 = arith.constant 0 : i32
    %0 = arith.cmpi eq, %arg0, %c0_i32 : i32
    %1 = arith.extui %0 : i1 to i32
    %c0_i32_0 = arith.constant 0 : i32
    %2 = arith.cmpi ne, %1, %c0_i32_0 : i32
    scf.if %2 {
      %cst_13 = arith.constant 0.000000e+00 : f32
      %28 = vector.broadcast %cst_13 : f32 to vector<21x256xf32>
      %c0_14 = arith.constant 0 : index
      %c0_15 = arith.constant 0 : index
      %29 = vector.load %arg6[%c0_14, %c0_15] : memref<21x256xf32, #tpu.memory_space<vmem>>, vector<21x256xf32>
      tpu.vector_store %arg6[%c0_14, %c0_15], %28 {strides = array<i32>} : memref<21x256xf32, #tpu.memory_space<vmem>>, vector<21x256xf32>,
      %cst_16 = arith.constant 0.000000e+00 : f32
      %30 = vector.broadcast %cst_16 : f32 to vector<21x1xf32>
      %c0_17 = arith.constant 0 : index
      %c0_18 = arith.constant 0 : index
      %31 = vector.load %arg7[%c0_17, %c0_18] : memref<21x1xf32, #tpu.memory_space<vmem>>, vector<21x1xf32>
      tpu.vector_store %arg7[%c0_17, %c0_18], %30 {strides = array<i32>} : memref<21x1xf32, #tpu.memory_space<vmem>>, vector<21x1xf32>,
    } else {
    }
    %c0 = arith.constant 0 : index
    %c0_1 = arith.constant 0 : index
    %3 = vector.load %arg2[%c0, %c0_1] : memref<21x128xf32, #tpu.memory_space<vmem>>, vector<21x128xf32>
    %c0_2 = arith.constant 0 : index
    %c0_3 = arith.constant 0 : index
    %4 = vector.load %arg1[%c0_2, %c0_3] : memref<128x256xf32, #tpu.memory_space<vmem>>, vector<128x256xf32>
    %5 = tpu.iota {dimensions = array<i32: 0>} : vector<21x128xi32>
    %cst = arith.constant dense<0xFF800000> : vector<128xf32>
    %6 = vector.multi_reduction <maximumf>, %3, %cst [0] : vector<21x128xf32> to vector<128xf32>
    %7 = vector.shape_cast %6 : vector<128xf32> to vector<1x128xf32>
    %8 = vector.broadcast %7 : vector<1x128xf32> to vector<21x128xf32>
    %9 = arith.cmpf oeq, %3, %8 : vector<21x128xf32>
    %c21_i32 = arith.constant 21 : i32
    %10 = vector.broadcast %c21_i32 : i32 to vector<21x128xi32>
    %11 = arith.select %9, %5, %10 : vector<21x128xi1>, vector<21x128xi32>
    %cst_4 = arith.constant dense<2147483647> : vector<128xi32>
    %12 = vector.multi_reduction <minsi>, %11, %cst_4 [0] : vector<21x128xi32> to vector<128xi32>
    %13 = vector.shape_cast %12 : vector<128xi32> to vector<1x128xi32>
    %c0_5 = arith.constant 0 : index
    %c0_6 = arith.constant 0 : index
    %14 = vector.load %arg5[%c0_5, %c0_6] : memref<1x128xi32, #tpu.memory_space<vmem>>, vector<1x128xi32>
    tpu.vector_store %arg5[%c0_5, %c0_6], %13 {strides = array<i32>} : memref<1x128xi32, #tpu.memory_space<vmem>>, vector<1x128xi32>,
    %15 = vector.broadcast %13 : vector<1x128xi32> to vector<21x128xi32>
    %16 = arith.cmpi eq, %5, %15 : vector<21x128xi32>
    %17 = arith.extui %16 : vector<21x128xi1> to vector<21x128xi32>
    %18 = arith.sitofp %17 : vector<21x128xi32> to vector<21x128xf32>
    %c0_i32_7 = arith.constant 0 : i32
    %19 = arith.cmpi ne, %arg0, %c0_i32_7 : i32
    %20 = arith.extui %19 : i1 to i32
    %c0_i32_8 = arith.constant 0 : i32
    %21 = arith.cmpi ne, %20, %c0_i32_8 : i32
    scf.if %21 {
      %c0_13 = arith.constant 0 : index
      %c0_14 = arith.constant 0 : index
      %28 = vector.load %arg6[%c0_13, %c0_14] : memref<21x256xf32, #tpu.memory_space<vmem>>, vector<21x256xf32>
      %cst_15 = arith.constant dense<0.000000e+00> : vector<21x256xf32>
      %29 = tpu.matmul %18, %4, %cst_15 {dimension_numbers = #tpu.dot_dimension_numbers<[1], [0], [0], [1], [0, 0, 1, 1], [], []>} : vector<21x128xf32>, vector<128x256xf32>, vector<21x256xf32> -> vector<21x256xf32>
      %30 = arith.addf %28, %29 : vector<21x256xf32>
      %c0_16 = arith.constant 0 : index
      %c0_17 = arith.constant 0 : index
      %31 = vector.load %arg6[%c0_16, %c0_17] : memref<21x256xf32, #tpu.memory_space<vmem>>, vector<21x256xf32>
      tpu.vector_store %arg6[%c0_16, %c0_17], %30 {strides = array<i32>} : memref<21x256xf32, #tpu.memory_space<vmem>>, vector<21x256xf32>,
      %c0_18 = arith.constant 0 : index
      %c0_19 = arith.constant 0 : index
      %32 = vector.load %arg7[%c0_18, %c0_19] : memref<21x1xf32, #tpu.memory_space<vmem>>, vector<21x1xf32>
      %cst_20 = arith.constant dense<0.000000e+00> : vector<21xf32>
      %33 = vector.multi_reduction <add>, %18, %cst_20 [1] : vector<21x128xf32> to vector<21xf32>
      %34 = vector.shape_cast %33 : vector<21xf32> to vector<21x1xf32>
      %35 = arith.addf %32, %34 : vector<21x1xf32>
      %c0_21 = arith.constant 0 : index
      %c0_22 = arith.constant 0 : index
      %36 = vector.load %arg7[%c0_21, %c0_22] : memref<21x1xf32, #tpu.memory_space<vmem>>, vector<21x1xf32>
      tpu.vector_store %arg7[%c0_21, %c0_22], %35 {strides = array<i32>} : memref<21x1xf32, #tpu.memory_space<vmem>>, vector<21x1xf32>,
    } else {
    }
    %c0_i32_9 = arith.constant 0 : i32
    %22 = arith.cmpi eq, %arg0, %c0_i32_9 : i32
    %23 = arith.extui %22 : i1 to i32
    %c0_i32_10 = arith.constant 0 : i32
    %24 = arith.cmpi ne, %23, %c0_i32_10 : i32
    scf.if %24 {
      %28 = tpu.iota {dimensions = array<i32: 1>} : vector<1x128xi32>
      %c128_i32 = arith.constant 128 : i32
      %29 = arith.muli %arg0, %c128_i32 : i32
      %30 = vector.broadcast %29 : i32 to vector<1x128xi32>
      %31 = arith.addi %30, %28 : vector<1x128xi32>
      %c8_i32 = arith.constant 8 : i32
      %32 = vector.broadcast %c8_i32 : i32 to vector<1x128xi32>
      %33 = arith.cmpi slt, %31, %32 : vector<1x128xi32>
      %34 = arith.extui %33 : vector<1x128xi1> to vector<1x128xi32>
      %35 = arith.sitofp %34 : vector<1x128xi32> to vector<1x128xf32>
      %36 = vector.broadcast %35 : vector<1x128xf32> to vector<21x128xf32>
      %37 = arith.mulf %18, %36 : vector<21x128xf32>
      %c0_13 = arith.constant 0 : index
      %c0_14 = arith.constant 0 : index
      %38 = vector.load %arg6[%c0_13, %c0_14] : memref<21x256xf32, #tpu.memory_space<vmem>>, vector<21x256xf32>
      %cst_15 = arith.constant dense<0.000000e+00> : vector<21x256xf32>
      %39 = tpu.matmul %37, %4, %cst_15 {dimension_numbers = #tpu.dot_dimension_numbers<[1], [0], [0], [1], [0, 0, 1, 1], [], []>} : vector<21x128xf32>, vector<128x256xf32>, vector<21x256xf32> -> vector<21x256xf32>
      %40 = arith.addf %38, %39 : vector<21x256xf32>
      %c0_16 = arith.constant 0 : index
      %c0_17 = arith.constant 0 : index
      %41 = vector.load %arg6[%c0_16, %c0_17] : memref<21x256xf32, #tpu.memory_space<vmem>>, vector<21x256xf32>
      tpu.vector_store %arg6[%c0_16, %c0_17], %40 {strides = array<i32>} : memref<21x256xf32, #tpu.memory_space<vmem>>, vector<21x256xf32>,
      %c0_18 = arith.constant 0 : index
      %c0_19 = arith.constant 0 : index
      %42 = vector.load %arg7[%c0_18, %c0_19] : memref<21x1xf32, #tpu.memory_space<vmem>>, vector<21x1xf32>
      %cst_20 = arith.constant dense<0.000000e+00> : vector<21xf32>
      %43 = vector.multi_reduction <add>, %37, %cst_20 [1] : vector<21x128xf32> to vector<21xf32>
      %44 = vector.shape_cast %43 : vector<21xf32> to vector<21x1xf32>
      %45 = arith.addf %42, %44 : vector<21x1xf32>
      %c0_21 = arith.constant 0 : index
      %c0_22 = arith.constant 0 : index
      %46 = vector.load %arg7[%c0_21, %c0_22] : memref<21x1xf32, #tpu.memory_space<vmem>>, vector<21x1xf32>
      tpu.vector_store %arg7[%c0_21, %c0_22], %45 {strides = array<i32>} : memref<21x1xf32, #tpu.memory_space<vmem>>, vector<21x1xf32>,
    } else {
    }
    %c0_i32_11 = arith.constant 0 : i32
    %25 = arith.cmpi eq, %arg0, %c0_i32_11 : i32
    %26 = arith.extui %25 : i1 to i32
    %c0_i32_12 = arith.constant 0 : i32
    %27 = arith.cmpi ne, %26, %c0_i32_12 : i32
    scf.if %27 {
      %c0_13 = arith.constant 0 : index
      %c0_14 = arith.constant 0 : index
      %28 = vector.load %arg3[%c0_13, %c0_14] : memref<21x256xf32, #tpu.memory_space<vmem>>, vector<21x256xf32>
      %c0_15 = arith.constant 0 : index
      %c0_16 = arith.constant 0 : index
      %29 = vector.load %arg7[%c0_15, %c0_16] : memref<21x1xf32, #tpu.memory_space<vmem>>, vector<21x1xf32>
      %cst_17 = arith.constant 0.000000e+00 : f32
      %30 = vector.broadcast %cst_17 : f32 to vector<21x1xf32>
      %31 = arith.cmpf ogt, %29, %30 : vector<21x1xf32>
      %c0_18 = arith.constant 0 : index
      %c0_19 = arith.constant 0 : index
      %32 = vector.load %arg6[%c0_18, %c0_19] : memref<21x256xf32, #tpu.memory_space<vmem>>, vector<21x256xf32>
      %cst_20 = arith.constant 1.000000e+00 : f32
      %33 = vector.broadcast %cst_20 : f32 to vector<21x1xf32>
      %34 = arith.select %31, %29, %33 : vector<21x1xi1>, vector<21x1xf32>
      %35 = vector.broadcast %34 : vector<21x1xf32> to vector<21x256xf32>
      %36 = arith.divf %32, %35 : vector<21x256xf32>
      %37 = arith.mulf %28, %36 : vector<21x256xf32>
      %cst_21 = arith.constant dense<0.000000e+00> : vector<21xf32>
      %38 = vector.multi_reduction <add>, %37, %cst_21 [1] : vector<21x256xf32> to vector<21xf32>
      %39 = vector.shape_cast %38 : vector<21xf32> to vector<21x1xf32>
      %40 = arith.mulf %28, %28 : vector<21x256xf32>
      %cst_22 = arith.constant dense<0.000000e+00> : vector<21xf32>
      %41 = vector.multi_reduction <add>, %40, %cst_22 [1] : vector<21x256xf32> to vector<21xf32>
      %42 = vector.shape_cast %41 : vector<21xf32> to vector<21x1xf32>
      %43 = math.sqrt %42 : vector<21x1xf32>
      %44 = arith.mulf %36, %36 : vector<21x256xf32>
      %cst_23 = arith.constant dense<0.000000e+00> : vector<21xf32>
      %45 = vector.multi_reduction <add>, %44, %cst_23 [1] : vector<21x256xf32> to vector<21xf32>
      %46 = vector.shape_cast %45 : vector<21xf32> to vector<21x1xf32>
      %47 = math.sqrt %46 : vector<21x1xf32>
      %48 = arith.mulf %43, %47 : vector<21x1xf32>
      %cst_24 = arith.constant 9.99999993E-9 : f32
      %49 = vector.broadcast %cst_24 : f32 to vector<21x1xf32>
      %50 = arith.maximumf %48, %49 : vector<21x1xf32>
      %51 = arith.divf %39, %50 : vector<21x1xf32>
      %52 = vector.broadcast %51 : vector<21x1xf32> to vector<21x256xf32>
      %53 = arith.mulf %28, %52 : vector<21x256xf32>
      %cst_25 = arith.constant 1.000000e+00 : f32
      %54 = vector.broadcast %cst_25 : f32 to vector<21x1xf32>
      %55 = arith.subf %54, %51 : vector<21x1xf32>
      %56 = vector.broadcast %55 : vector<21x1xf32> to vector<21x256xf32>
      %57 = arith.mulf %36, %56 : vector<21x256xf32>
      %58 = arith.addf %53, %57 : vector<21x256xf32>
      %59 = vector.shape_cast %31 : vector<21x1xi1> to vector<21x1xi1>
      %60 = vector.broadcast %59 : vector<21x1xi1> to vector<21x256xi1>
      %61 = arith.select %60, %58, %28 : vector<21x256xi1>, vector<21x256xf32>
      %c0_26 = arith.constant 0 : index
      %c0_27 = arith.constant 0 : index
      %62 = vector.load %arg4[%c0_26, %c0_27] : memref<21x256xf32, #tpu.memory_space<vmem>>, vector<21x256xf32>
      tpu.vector_store %arg4[%c0_26, %c0_27], %61 {strides = array<i32>} : memref<21x256xf32, #tpu.memory_space<vmem>>, vector<21x256xf32>,
    } else {
    }
    return
  }
  func.func @transform_0(%arg0: i32) -> (i32, i32) {
    %c0_i32 = arith.constant 0 : i32
    %c0_i32_0 = arith.constant 0 : i32
    return %arg0, %c0_i32 : i32, i32
  }
  func.func @transform_1(%arg0: i32) -> (i32, i32) {
    %c0_i32 = arith.constant 0 : i32
    %c0_i32_0 = arith.constant 0 : i32
    return %c0_i32, %arg0 : i32, i32
  }
  func.func @transform_2(%arg0: i32) -> (i32, i32) {
    %c0_i32 = arith.constant 0 : i32
    %c0_i32_0 = arith.constant 0 : i32
    %c0_i32_1 = arith.constant 0 : i32
    return %c0_i32, %c0_i32_0 : i32, i32
  }
  func.func @transform_3(%arg0: i32) -> (i32, i32) {
    %c0_i32 = arith.constant 0 : i32
    %c0_i32_0 = arith.constant 0 : i32
    %c0_i32_1 = arith.constant 0 : i32
    return %c0_i32, %c0_i32_0 : i32, i32
  }
  func.func @transform_4(%arg0: i32) -> (i32, i32) {
    %c0_i32 = arith.constant 0 : i32
    %c0_i32_0 = arith.constant 0 : i32
    return %c0_i32, %arg0 : i32, i32
  }
}

</mosaic_0001>

<llo_original>
// kernel: tpu_custom_call.1
$region0: #{tpu_custom_call.1}
  #allocation0 [shape = 'u32[]', space=smem, size = 0x4, offset = 0x4, fixed_abs, tag = 'smem constant byte address 0x4 - core index']
  #allocation1 [shape = 'u32[144,128]{1,0:T(1,128)}', space=vmem, size = 0x12000, scoped, tag = 'internal scratch']
  #allocation2 [shape = 'f32[21,256]{1,0:T(8,128)}', space=vmem, size = 0x6000, scoped, tag = 'scratch operand']
  #allocation3 [shape = 'f32[21,1]{1,0:T(8,128)}', space=vmem, size = 0x3000, scoped, tag = 'scratch operand']
  %s0 = inlined_call_operand.hbm [shape: f32[128,256], index: 0, kind: input, shape index: {}]
  %s1 = inlined_call_operand.vmem [shape: f32[21,128], index: 1, kind: input, shape index: {}]
  %s2 = inlined_call_operand.hbm [shape: f32[21,256], index: 2, kind: input, shape index: {}, may-alias: {2,3}]
  %s3 = inlined_call_operand.hbm [shape: f32[21,256], index: 3, kind: output, shape index: {0}, may-alias: {2,3}]
  %s4 = inlined_call_operand.hbm [shape: s32[1,128], index: 4, kind: output, shape index: {1}]
  %5 = xla_tuple %s3, %s4
  %s6 = sld [smem:[#allocation0]]
  $region50: #{tpu_custom_call.1} parent=0
    _
  %s8 = ssub.s32 1, %s6
  %s9 = scalar_select 0, %s8, %s6
  $region1: #{tpu_custom_call.1} parent=0
    #allocation4 [shape = 'u8[131072]{0}', space=vmem, size = 0x20000, scoped, tag = 'input window, operand 0, single buffered']
    #allocation5 [shape = 's32[1]{0}', space=sflag, size = 0x4, scoped, tag = 'scoped memory for tpu_custom_call.1']
    #allocation6 [shape = 's32[1]{0}', space=sflag, size = 0x4, scoped, tag = 'scoped memory for tpu_custom_call.1']
    #allocation7 [shape = 'u8[24576]{0}', space=vmem, size = 0x6000, scoped, tag = 'input window, operand 2, single buffered']
    #allocation8 [shape = 's32[1]{0}', space=sflag, size = 0x4, scoped, tag = 'scoped memory for tpu_custom_call.1']
    #allocation9 [shape = 'u8[24576]{0}', space=vmem, size = 0x6000, scoped, tag = 'output window, operand 0, single buffered']
    #allocation10 [shape = 'u8[512]{0}', space=vmem, size = 0x400, scoped, tag = 'output window, operand 1, single buffered']
    #allocation11 [shape = 's32[1]{0}', space=sflag, size = 0x4, scoped, tag = 'scoped memory for tpu_custom_call.1']
    %10 = vsyncpa [#allocation5], 0
    %11 = vsyncpa [#allocation8], 0
    %12 = vsyncpa [#allocation6], 0
    %13 = vsyncpa [#allocation11], 0
    // Predicated region
    $region2: #{tpu_custom_call.1} parent=1 // pred_check
      _
    $region3: #{tpu_custom_call.1} parent=1 // pred_check_branch
      %15 = sbr.rel (0) target = $region5
    $region4: #{tpu_custom_call.1} parent=1 // pred_region
      %s17 = ssub.s32 4096, 4096
      %18 = vsyncadd [#allocation5], %s17
      %s19 = sshll.u32 [#allocation4], 4
      %s20 = int_to_ptr.vmem [resolvable:$true] %s19
      %25 = dma.hbm_to_vmem [thread:$0]  %s0, 4096, %s20, [#allocation5], 256, 256, 16
    $region5: #{tpu_custom_call.1} parent=1 // pred_fallthru
      _
    // Predicated region
    $region6: #{tpu_custom_call.1} parent=1 // pred_check
      _
    $region7: #{tpu_custom_call.1} parent=1 // pred_check_branch
      %27 = sbr.rel (0) target = $region9
    $region8: #{tpu_custom_call.1} parent=1 // pred_region
      _
    $region9: #{tpu_custom_call.1} parent=1 // pred_fallthru
      _
    // Predicated region
    $region10: #{tpu_custom_call.1} parent=1 // pred_check
      _
    $region11: #{tpu_custom_call.1} parent=1 // pred_check_branch
      %29 = sbr.rel (0) target = $region13
    $region12: #{tpu_custom_call.1} parent=1 // pred_region
      %s31 = ssub.s32 768, 768
      %32 = vsyncadd [#allocation8], %s31
      %s33 = sshll.u32 [#allocation7], 4
      %s34 = int_to_ptr.vmem [resolvable:$true] %s33
      %39 = dma.hbm_to_vmem [thread:$0]  %s2, 768, %s34, [#allocation8], 256, 256, 16
    $region13: #{tpu_custom_call.1} parent=1 // pred_fallthru
      _
    // Predicated region
    $region14: #{tpu_custom_call.1} parent=1 // pred_check
      _
    $region15: #{tpu_custom_call.1} parent=1 // pred_check_branch
      %41 = sbr.rel (0) target = $region17
    $region16: #{tpu_custom_call.1} parent=1 // pred_region
      %42 = dma.done [#allocation5], 4096
    $region17: #{tpu_custom_call.1} parent=1 // pred_fallthru
      _
    // Predicated region
    $region18: #{tpu_custom_call.1} parent=1 // pred_check
      _
    $region19: #{tpu_custom_call.1} parent=1 // pred_check_branch
      %44 = sbr.rel (0) target = $region21
    $region20: #{tpu_custom_call.1} parent=1 // pred_region
      %45 = dma.done [#allocation8], 768
    $region21: #{tpu_custom_call.1} parent=1 // pred_fallthru
      _
    %p46 = scmp.eq.s32.totalorder 0, 0
    // Predicated region
    $region22: #{tpu_custom_call.1} parent=1 // pred_check
      %p47 = pneg %p46
    $region23: #{tpu_custom_call.1} parent=1 // pred_check_branch
      %49 = sbr.rel (%p47) target = $region25
    $region24: #{tpu_custom_call.1} parent=1 // pred_region
      %50 = vst [vmem:[#allocation2] sm:$0xff] 0.0
      %51 = vst [vmem:[#allocation2 + $0x8] sm:$0xff] 0.0
      %52 = vst [vmem:[#allocation2 + $0x10] sm:$0xff] 0.0
      %53 = vst [vmem:[#allocation2 + $0x18] sm:$0xff] 0.0
      %54 = vst [vmem:[#allocation2 + $0x20] sm:$0x1f] 0.0
      %55 = vst [vmem:[#allocation2 + $0x28] sm:$0x1f] 0.0
      %vm56 = vcmask 7168
      %57 = vst.msk [vmem:[#allocation3] sm:$0xff] %vm56, 0.0
      %58 = vst.msk [vmem:[#allocation3 + $0x8] sm:$0xff] %vm56, 0.0
      %vm59 = vcmask 4096
      %60 = vst.msk [vmem:[#allocation3 + $0x10] sm:$0x1f] %vm59, 0.0
    $region25: #{tpu_custom_call.1} parent=1 // pred_fallthru
      _
    %v61 = vld [vmem:[%s1] sm:$0xff]
    %v62 = vld [vmem:[%s1 + $0x8] sm:$0xff]
    %v63 = vld [vmem:[%s1 + $0x10] sm:$0x1f]
    %v64 = vld [vmem:[#allocation4] sm:$0xff]
    %v65 = vld [vmem:[#allocation4 + $0x8] sm:$0xff]
    %v66 = vld [vmem:[#allocation4 + $0x10] sm:$0xff]
    %v67 = vld [vmem:[#allocation4 + $0x18] sm:$0xff]
    %v68 = vld [vmem:[#allocation4 + $0x20] sm:$0xff]
    %v69 = vld [vmem:[#allocation4 + $0x28] sm:$0xff]
    %v70 = vld [vmem:[#allocation4 + $0x30] sm:$0xff]
    %v71 = vld [vmem:[#allocation4 + $0x38] sm:$0xff]
    %v72 = vld [vmem:[#allocation4 + $0x40] sm:$0xff]
    %v73 = vld [vmem:[#allocation4 + $0x48] sm:$0xff]
    %v74 = vld [vmem:[#allocation4 + $0x50] sm:$0xff]
    %v75 = vld [vmem:[#allocation4 + $0x58] sm:$0xff]
    %v76 = vld [vmem:[#allocation4 + $0x60] sm:$0xff]
    %v77 = vld [vmem:[#allocation4 + $0x68] sm:$0xff]
    %v78 = vld [vmem:[#allocation4 + $0x70] sm:$0xff]
    %v79 = vld [vmem:[#allocation4 + $0x78] sm:$0xff]
    %v80 = vld [vmem:[#allocation4 + $0x80] sm:$0xff]
    %v81 = vld [vmem:[#allocation4 + $0x88] sm:$0xff]
    %v82 = vld [vmem:[#allocation4 + $0x90] sm:$0xff]
    %v83 = vld [vmem:[#allocation4 + $0x98] sm:$0xff]
    %v84 = vld [vmem:[#allocation4 + $0xa0] sm:$0xff]
    %v85 = vld [vmem:[#allocation4 + $0xa8] sm:$0xff]
    %v86 = vld [vmem:[#allocation4 + $0xb0] sm:$0xff]
    %v87 = vld [vmem:[#allocation4 + $0xb8] sm:$0xff]
    %v88 = vld [vmem:[#allocation4 + $0xc0] sm:$0xff]
    %v89 = vld [vmem:[#allocation4 + $0xc8] sm:$0xff]
    %v90 = vld [vmem:[#allocation4 + $0xd0] sm:$0xff]
    %v91 = vld [vmem:[#allocation4 + $0xd8] sm:$0xff]
    %v92 = vld [vmem:[#allocation4 + $0xe0] sm:$0xff]
    %v93 = vld [vmem:[#allocation4 + $0xe8] sm:$0xff]
    %v94 = vld [vmem:[#allocation4 + $0xf0] sm:$0xff]
    %v95 = vld [vmem:[#allocation4 + $0xf8] sm:$0xff]
    %v96 = vlaneseq
    %v97 = vshrl.u32 %v96, 7
    %v98 = vadd.s32 %v97, 8
    %v99 = vadd.s32 %v97, 16
    %vm100 = vcmask 1044480
    %v101 = vsel %vm100, %v63, -inf
    %v102 = vmax.f32 %v61, %v62
    %v103 = vmax.f32 %v102, %v101
    %v104 = vrot.slane %v103, 4
    %v105 = vmax.f32 %v103, %v104
    %v106 = vrot.slane %v105, 2
    %v107 = vmax.f32 %v105, %v106
    %v108 = vrot.slane %v107, 1
    %v109 = vmax.f32 %v107, %v108
    %vm110 = vcmp.eq.f32.partialorder %v61, %v109
    %vm111 = vcmp.eq.f32.partialorder %v62, %v109
    %vm112 = vcmp.eq.f32.partialorder %v63, %v109
    %v113 = vsel %vm110, %v97, 21
    %v114 = vsel %vm111, %v98, 21
    %v115 = vsel %vm112, %v99, 21
    %v116 = vsel %vm100, %v115, 2147483647
    %vm117 = vcmp.lt.s32.totalorder %v113, %v114
    %v118 = vsel %vm117, %v113, %v114
    %vm119 = vcmp.lt.s32.totalorder %v118, %v116
    %v120 = vsel %vm119, %v118, %v116
    %v121 = vrot.slane %v120, 4
    %vm122 = vcmp.lt.s32.totalorder %v120, %v121
    %v123 = vsel %vm122, %v120, %v121
    %v124 = vrot.slane %v123, 2
    %vm125 = vcmp.lt.s32.totalorder %v123, %v124
    %v126 = vsel %vm125, %v123, %v124
    %v127 = vrot.slane %v126, 1
    %vm128 = vcmp.lt.s32.totalorder %v126, %v127
    %v129 = vsel %vm128, %v126, %v127
    %130 = vst [vmem:[#allocation10] sm:$0x1] %v129
    %vm131 = vcmp.eq.s32.totalorder %v97, %v129
    %vm132 = vcmp.eq.s32.totalorder %v98, %v129
    %vm133 = vcmp.eq.s32.totalorder %v99, %v129
    %v134 = vsel %vm131, 1, 0
    %v135 = vsel %vm132, 1, 0
    %v136 = vsel %vm133, 1, 0
    %v137 = vcvt.s32.f32 %v134
    %v138 = vcvt.s32.f32 %v135
    %v139 = vcvt.s32.f32 %v136
    %p140 = scmp.ne.s32.totalorder 0, 0
    // Predicated region
    $region26: #{tpu_custom_call.1} parent=1 // pred_check
      %p141 = pneg %p140
    $region27: #{tpu_custom_call.1} parent=1 // pred_check_branch
      %143 = sbr.rel (%p141) target = $region29
    $region28: #{tpu_custom_call.1} parent=1 // pred_region
      %v144 = vld [vmem:[#allocation2] sm:$0xff]
      %v145 = vld [vmem:[#allocation2 + $0x8] sm:$0xff]
      %v146 = vld [vmem:[#allocation2 + $0x10] sm:$0xff]
      %v147 = vld [vmem:[#allocation2 + $0x18] sm:$0xff]
      %v148 = vld [vmem:[#allocation2 + $0x20] sm:$0x1f]
      %v149 = vld [vmem:[#allocation2 + $0x28] sm:$0x1f]
      %150 = vmatprep.subr.mxu0 %v65
      %151 = vmatpush1.msra.mxu0 %v64
      %152 = vmatprep.subr.mxu0 %v67
      %153 = vmatpush1.msra.mxu0 %v66
      %154 = vmatprep.subr.mxu0 %v69
      %155 = vmatpush1.msra.mxu0 %v68
      %156 = vmatprep.subr.mxu0 %v71
      %157 = vmatpush1.msra.mxu0 %v70
      %158 = vmatprep.subr.mxu0 %v73
      %159 = vmatpush1.msra.mxu0 %v72
      %160 = vmatprep.subr.mxu0 %v75
      %161 = vmatpush1.msra.mxu0 %v74
      %162 = vmatprep.subr.mxu0 %v77
      %163 = vmatpush1.msra.mxu0 %v76
      %164 = vmatprep.subr.mxu0 %v79
      %165 = vmatpush1.msra.mxu0 %v78
      %166 = vmatprep.subr.mxu0 %v81
      %167 = vmatpush1.msra.mxu0 %v80
      %168 = vmatprep.subr.mxu0 %v83
      %169 = vmatpush1.msra.mxu0 %v82
      %170 = vmatprep.subr.mxu0 %v85
      %171 = vmatpush1.msra.mxu0 %v84
      %172 = vmatprep.subr.mxu0 %v87
      %173 = vmatpush1.msra.mxu0 %v86
      %174 = vmatprep.subr.mxu0 %v89
      %175 = vmatpush1.msra.mxu0 %v88
      %176 = vmatprep.subr.mxu0 %v91
      %177 = vmatpush1.msra.mxu0 %v90
      %178 = vmatprep.subr.mxu0 %v93
      %179 = vmatpush1.msra.mxu0 %v92
      %180 = vmatprep.subr.mxu0 %v95
      %181 = vmatpush1.msra.mxu0 %v94
      %182 = vmatprep.subr.mxu0 0.0
      %183 = vmatpush1.msra.mxu0 0.0
      %184 = vmatprep.subr.mxu0 0.0
      %185 = vmatpush1.msra.mxu0 0.0
      %186 = vmatprep.subr.mxu0 0.0
      %187 = vmatpush1.msra.mxu0 0.0
      %188 = vmatprep.subr.mxu0 0.0
      %189 = vmatpush1.msra.mxu0 0.0
      %190 = vmatprep.subr.mxu0 0.0
      %191 = vmatpush1.msra.mxu0 0.0
      %192 = vmatprep.subr.mxu0 0.0
      %193 = vmatpush1.msra.mxu0 0.0
      %194 = vmatprep.subr.mxu0 0.0
      %195 = vmatpush1.msra.mxu0 0.0
      %196 = vmatprep.subr.mxu0 0.0
      %197 = vmatpush1.msra.mxu0 0.0
      %198 = vmatprep.subr.mxu0 0.0
      %199 = vmatpush1.msra.mxu0 0.0
      %200 = vmatprep.subr.mxu0 0.0
      %201 = vmatpush1.msra.mxu0 0.0
      %202 = vmatprep.subr.mxu0 0.0
      %203 = vmatpush1.msra.mxu0 0.0
      %204 = vmatprep.subr.mxu0 0.0
      %205 = vmatpush1.msra.mxu0 0.0
      %206 = vmatprep.subr.mxu0 0.0
      %207 = vmatpush1.msra.mxu0 0.0
      %208 = vmatprep.subr.mxu0 0.0
      %209 = vmatpush1.msra.mxu0 0.0
      %210 = vmatprep.subr.mxu0 0.0
      %211 = vmatpush1.msra.mxu0 0.0
      %212 = vmatprep.subr.mxu0 0.0
      %213 = vmatpush1.msra.mxu0 0.0
      %214 = vmatprep.mubr.f32.mxu0 0.0
      %215 = vmatmul.mubr.f32.gmra.mrb[0].mxu0 %v137
      %v216 = vpop.f32.mrb[0].mxu0
      %v217 = vadd.f32 0.0, %v216
      %v218 = vpop.f32.mrb[0].mxu0
      %v219 = vadd.f32 0.0, %v218
      %220 = vmatprep.mubr.f32.mxu0 0.0
      %221 = vmatmul.mubr.f32.gmra.mrb[0].mxu0 %v138
      %v222 = vpop.f32.mrb[0].mxu0
      %v223 = vadd.f32 0.0, %v222
      %v224 = vpop.f32.mrb[0].mxu0
      %v225 = vadd.f32 0.0, %v224
      %226 = vmatprep.mubr.f32.mxu0 0.0
      %227 = vmatmul.mubr.f32.gmra.mrb[0].mxu0 %v139
      %v228 = vpop.f32.mrb[0].mxu0
      %v229 = vadd.f32 0.0, %v228
      %v230 = vpop.f32.mrb[0].mxu0
      %v231 = vadd.f32 0.0, %v230
      %232 = vdwg.mxu0
      %v233 = vadd.f32 %v144, %v217
      %v234 = vadd.f32 %v145, %v219
      %v235 = vadd.f32 %v146, %v223
      %v236 = vadd.f32 %v147, %v225
      %v237 = vadd.f32 %v148, %v229
      %v238 = vadd.f32 %v149, %v231
      %239 = vst [vmem:[#allocation2] sm:$0xff] %v233
      %240 = vst [vmem:[#allocation2 + $0x8] sm:$0xff] %v234
      %241 = vst [vmem:[#allocation2 + $0x10] sm:$0xff] %v235
      %242 = vst [vmem:[#allocation2 + $0x18] sm:$0xff] %v236
      %243 = vst [vmem:[#allocation2 + $0x20] sm:$0x1f] %v237
      %244 = vst [vmem:[#allocation2 + $0x28] sm:$0x1f] %v238
      %v245 = vld [vmem:[#allocation3] sm:$0xff]
      %v246 = vld [vmem:[#allocation3 + $0x8] sm:$0xff]
      %v247 = vld [vmem:[#allocation3 + $0x10] sm:$0x1f]
      %248 = vadd.xlane.f32.xlu0 %v137
      %v249 = vpop.xlane.xlu0 %248
      %250 = vadd.xlane.f32.xlu0 %v138
      %v251 = vpop.xlane.xlu0 %250
      %v252 = vsel %vm100, %v139, 0.0
      %253 = vadd.xlane.f32.xlu0 %v252
      %v254 = vpop.xlane.xlu0 %253
      %v255 = vadd.f32 %v245, %v249
      %v256 = vadd.f32 %v246, %v251
      %v257 = vadd.f32 %v247, %v254
      %vm258 = vcmask 7168
      %259 = vst.msk [vmem:[#allocation3] sm:$0xff] %vm258, %v255
      %260 = vst.msk [vmem:[#allocation3 + $0x8] sm:$0xff] %vm258, %v256
      %vm261 = vcmask 4096
      %262 = vst.msk [vmem:[#allocation3 + $0x10] sm:$0x1f] %vm261, %v257
    $region29: #{tpu_custom_call.1} parent=1 // pred_fallthru
      _
    // Predicated region
    $region30: #{tpu_custom_call.1} parent=1 // pred_check
      %p263 = pneg %p46
    $region31: #{tpu_custom_call.1} parent=1 // pred_check_branch
      %265 = sbr.rel (%p263) target = $region33
    $region32: #{tpu_custom_call.1} parent=1 // pred_region
      %v266 = vlaneseq
      %v267 = vand.u32 %v266, 127
      %s268 = smul.u32 0, 128
      %v269 = vstv %s268
      %v270 = vadd.s32 %v269, %v267
      %vm271 = vcmp.lt.s32.totalorder %v270, 8
      %v272 = vsel %vm271, 1, 0
      %v273 = vcvt.s32.f32 %v272
      %v274 = vmul.f32 %v137, %v273
      %v275 = vmul.f32 %v138, %v273
      %v276 = vmul.f32 %v139, %v273
      %v277 = vld [vmem:[#allocation2] sm:$0xff]
      %v278 = vld [vmem:[#allocation2 + $0x8] sm:$0xff]
      %v279 = vld [vmem:[#allocation2 + $0x10] sm:$0xff]
      %v280 = vld [vmem:[#allocation2 + $0x18] sm:$0xff]
      %v281 = vld [vmem:[#allocation2 + $0x20] sm:$0x1f]
      %v282 = vld [vmem:[#allocation2 + $0x28] sm:$0x1f]
      %283 = vmatprep.subr.mxu0 %v65
      %284 = vmatpush1.msra.mxu0 %v64
      %285 = vmatprep.subr.mxu0 %v67
      %286 = vmatpush1.msra.mxu0 %v66
      %287 = vmatprep.subr.mxu0 %v69
      %288 = vmatpush1.msra.mxu0 %v68
      %289 = vmatprep.subr.mxu0 %v71
      %290 = vmatpush1.msra.mxu0 %v70
      %291 = vmatprep.subr.mxu0 %v73
      %292 = vmatpush1.msra.mxu0 %v72
      %293 = vmatprep.subr.mxu0 %v75
      %294 = vmatpush1.msra.mxu0 %v74
      %295 = vmatprep.subr.mxu0 %v77
      %296 = vmatpush1.msra.mxu0 %v76
      %297 = vmatprep.subr.mxu0 %v79
      %298 = vmatpush1.msra.mxu0 %v78
      %299 = vmatprep.subr.mxu0 %v81
      %300 = vmatpush1.msra.mxu0 %v80
      %301 = vmatprep.subr.mxu0 %v83
      %302 = vmatpush1.msra.mxu0 %v82
      %303 = vmatprep.subr.mxu0 %v85
      %304 = vmatpush1.msra.mxu0 %v84
      %305 = vmatprep.subr.mxu0 %v87
      %306 = vmatpush1.msra.mxu0 %v86
      %307 = vmatprep.subr.mxu0 %v89
      %308 = vmatpush1.msra.mxu0 %v88
      %309 = vmatprep.subr.mxu0 %v91
      %310 = vmatpush1.msra.mxu0 %v90
      %311 = vmatprep.subr.mxu0 %v93
      %312 = vmatpush1.msra.mxu0 %v92
      %313 = vmatprep.subr.mxu0 %v95
      %314 = vmatpush1.msra.mxu0 %v94
      %315 = vmatprep.subr.mxu0 0.0
      %316 = vmatpush1.msra.mxu0 0.0
      %317 = vmatprep.subr.mxu0 0.0
      %318 = vmatpush1.msra.mxu0 0.0
      %319 = vmatprep.subr.mxu0 0.0
      %320 = vmatpush1.msra.mxu0 0.0
      %321 = vmatprep.subr.mxu0 0.0
      %322 = vmatpush1.msra.mxu0 0.0
      %323 = vmatprep.subr.mxu0 0.0
      %324 = vmatpush1.msra.mxu0 0.0
      %325 = vmatprep.subr.mxu0 0.0
      %326 = vmatpush1.msra.mxu0 0.0
      %327 = vmatprep.subr.mxu0 0.0
      %328 = vmatpush1.msra.mxu0 0.0
      %329 = vmatprep.subr.mxu0 0.0
      %330 = vmatpush1.msra.mxu0 0.0
      %331 = vmatprep.subr.mxu0 0.0
      %332 = vmatpush1.msra.mxu0 0.0
      %333 = vmatprep.subr.mxu0 0.0
      %334 = vmatpush1.msra.mxu0 0.0
      %335 = vmatprep.subr.mxu0 0.0
      %336 = vmatpush1.msra.mxu0 0.0
      %337 = vmatprep.subr.mxu0 0.0
      %338 = vmatpush1.msra.mxu0 0.0
      %339 = vmatprep.subr.mxu0 0.0
      %340 = vmatpush1.msra.mxu0 0.0
      %341 = vmatprep.subr.mxu0 0.0
      %342 = vmatpush1.msra.mxu0 0.0
      %343 = vmatprep.subr.mxu0 0.0
      %344 = vmatpush1.msra.mxu0 0.0
      %345 = vmatprep.subr.mxu0 0.0
      %346 = vmatpush1.msra.mxu0 0.0
      %347 = vmatprep.mubr.f32.mxu0 0.0
      %348 = vmatmul.mubr.f32.gmra.mrb[0].mxu0 %v274
      %v349 = vpop.f32.mrb[0].mxu0
      %v350 = vadd.f32 0.0, %v349
      %v351 = vpop.f32.mrb[0].mxu0
      %v352 = vadd.f32 0.0, %v351
      %353 = vmatprep.mubr.f32.mxu0 0.0
      %354 = vmatmul.mubr.f32.gmra.mrb[0].mxu0 %v275
      %v355 = vpop.f32.mrb[0].mxu0
      %v356 = vadd.f32 0.0, %v355
      %v357 = vpop.f32.mrb[0].mxu0
      %v358 = vadd.f32 0.0, %v357
      %359 = vmatprep.mubr.f32.mxu0 0.0
      %360 = vmatmul.mubr.f32.gmra.mrb[0].mxu0 %v276
      %v361 = vpop.f32.mrb[0].mxu0
      %v362 = vadd.f32 0.0, %v361
      %v363 = vpop.f32.mrb[0].mxu0
      %v364 = vadd.f32 0.0, %v363
      %365 = vdwg.mxu0
      %v366 = vadd.f32 %v277, %v350
      %v367 = vadd.f32 %v278, %v352
      %v368 = vadd.f32 %v279, %v356
      %v369 = vadd.f32 %v280, %v358
      %v370 = vadd.f32 %v281, %v362
      %v371 = vadd.f32 %v282, %v364
      %372 = vst [vmem:[#allocation2] sm:$0xff] %v366
      %373 = vst [vmem:[#allocation2 + $0x8] sm:$0xff] %v367
      %374 = vst [vmem:[#allocation2 + $0x10] sm:$0xff] %v368
      %375 = vst [vmem:[#allocation2 + $0x18] sm:$0xff] %v369
      %376 = vst [vmem:[#allocation2 + $0x20] sm:$0x1f] %v370
      %377 = vst [vmem:[#allocation2 + $0x28] sm:$0x1f] %v371
      %v378 = vld [vmem:[#allocation3] sm:$0xff]
      %v379 = vld [vmem:[#allocation3 + $0x8] sm:$0xff]
      %v380 = vld [vmem:[#allocation3 + $0x10] sm:$0x1f]
      %381 = vadd.xlane.f32.xlu0 %v274
      %v382 = vpop.xlane.xlu0 %381
      %383 = vadd.xlane.f32.xlu0 %v275
      %v384 = vpop.xlane.xlu0 %383
      %v385 = vsel %vm100, %v276, 0.0
      %386 = vadd.xlane.f32.xlu0 %v385
      %v387 = vpop.xlane.xlu0 %386
      %v388 = vadd.f32 %v378, %v382
      %v389 = vadd.f32 %v379, %v384
      %v390 = vadd.f32 %v380, %v387
      %vm391 = vcmask 7168
      %392 = vst.msk [vmem:[#allocation3] sm:$0xff] %vm391, %v388
      %393 = vst.msk [vmem:[#allocation3 + $0x8] sm:$0xff] %vm391, %v389
      %vm394 = vcmask 4096
      %395 = vst.msk [vmem:[#allocation3 + $0x10] sm:$0x1f] %vm394, %v390
      %v396 = vld [vmem:[#allocation7] sm:$0xff]
      %v397 = vld [vmem:[#allocation7 + $0x8] sm:$0xff]
      %v398 = vld [vmem:[#allocation7 + $0x10] sm:$0xff]
      %v399 = vld [vmem:[#allocation7 + $0x18] sm:$0xff]
      %v400 = vld [vmem:[#allocation7 + $0x20] sm:$0x1f]
      %v401 = vld [vmem:[#allocation7 + $0x28] sm:$0x1f]
      %v402 = vld [vmem:[#allocation3] sm:$0xff]
      %v403 = vld [vmem:[#allocation3 + $0x8] sm:$0xff]
      %v404 = vld [vmem:[#allocation3 + $0x10] sm:$0x1f]
      %vm405 = vcmp.gt.f32.partialorder %v402, 0.0
      %vm406 = vcmp.gt.f32.partialorder %v403, 0.0
      %vm407 = vcmp.gt.f32.partialorder %v404, 0.0
      %v408 = vld [vmem:[#allocation2] sm:$0xff]
      %v409 = vld [vmem:[#allocation2 + $0x8] sm:$0xff]
      %v410 = vld [vmem:[#allocation2 + $0x10] sm:$0xff]
      %v411 = vld [vmem:[#allocation2 + $0x18] sm:$0xff]
      %v412 = vld [vmem:[#allocation2 + $0x20] sm:$0x1f]
      %v413 = vld [vmem:[#allocation2 + $0x28] sm:$0x1f]
      %v414 = vsel %vm405, %v402, 1.0
      %v415 = vsel %vm406, %v403, 1.0
      %v416 = vsel %vm407, %v404, 1.0
      %418 = vset.pattern.permute.xlu0 0
      %419 = vperm.xlu0 %418, %v414
      %v420 = vpop.permute.xlu0 %419
      %423 = vset.pattern.permute.xlu0 0
      %424 = vperm.xlu0 %423, %v415
      %v425 = vpop.permute.xlu0 %424
      %428 = vset.pattern.permute.xlu0 0
      %429 = vperm.xlu0 %428, %v416
      %v430 = vpop.permute.xlu0 %429
      %v432 = vrcp.pop %v420
      %v433 = vmul.f32 %v408, %v432
      %v434 = vmul.f32 %v409, %v432
      %v435 = vrcp.pop %v425
      %v436 = vmul.f32 %v410, %v435
      %v437 = vmul.f32 %v411, %v435
      %v438 = vrcp.pop %v430
      %v439 = vmul.f32 %v412, %v438
      %v440 = vmul.f32 %v413, %v438
      %v441 = vmul.f32 %v396, %v433
      %v442 = vmul.f32 %v397, %v434
      %v443 = vmul.f32 %v398, %v436
      %v444 = vmul.f32 %v399, %v437
      %v445 = vmul.f32 %v400, %v439
      %v446 = vmul.f32 %v401, %v440
      %v447 = vadd.f32 %v441, %v442
      %448 = vadd.xlane.f32.xlu0 %v447
      %v449 = vpop.xlane.xlu0 %448
      %v450 = vadd.f32 %v443, %v444
      %451 = vadd.xlane.f32.xlu0 %v450
      %v452 = vpop.xlane.xlu0 %451
      %v453 = vsel %vm100, %v445, 0.0
      %v454 = vsel %vm100, %v446, 0.0
      %v455 = vadd.f32 %v453, %v454
      %456 = vadd.xlane.f32.xlu0 %v455
      %v457 = vpop.xlane.xlu0 %456
      %v458 = vmul.f32 %v396, %v396
      %v459 = vmul.f32 %v397, %v397
      %v460 = vmul.f32 %v398, %v398
      %v461 = vmul.f32 %v399, %v399
      %v462 = vmul.f32 %v400, %v400
      %v463 = vmul.f32 %v401, %v401
      %v464 = vadd.f32 %v458, %v459
      %465 = vadd.xlane.f32.xlu0 %v464
      %v466 = vpop.xlane.xlu0 %465
      %v467 = vadd.f32 %v460, %v461
      %468 = vadd.xlane.f32.xlu0 %v467
      %v469 = vpop.xlane.xlu0 %468
      %v470 = vsel %vm100, %v462, 0.0
      %v471 = vsel %vm100, %v463, 0.0
      %v472 = vadd.f32 %v470, %v471
      %473 = vadd.xlane.f32.xlu0 %v472
      %v474 = vpop.xlane.xlu0 %473
      %v475 = vrsqrt.pop %v466
      %v476 = vmul.f32 %v466, %v475
      %vm477 = vcmp.eq.f32.partialorder %v466, inf
      %v478 = vsel %vm477, %v466, %v476
      %vm479 = vcmp.eq.f32.partialorder %v466, 0.0
      %v480 = vand.u32 %v466, 2147483648
      %v481 = vsel %vm479, %v480, %v478
      %v482 = vrsqrt.pop %v469
      %v483 = vmul.f32 %v469, %v482
      %vm484 = vcmp.eq.f32.partialorder %v469, inf
      %v485 = vsel %vm484, %v469, %v483
      %vm486 = vcmp.eq.f32.partialorder %v469, 0.0
      %v487 = vand.u32 %v469, 2147483648
      %v488 = vsel %vm486, %v487, %v485
      %v489 = vrsqrt.pop %v474
      %v490 = vmul.f32 %v474, %v489
      %vm491 = vcmp.eq.f32.partialorder %v474, inf
      %v492 = vsel %vm491, %v474, %v490
      %vm493 = vcmp.eq.f32.partialorder %v474, 0.0
      %v494 = vand.u32 %v474, 2147483648
      %v495 = vsel %vm493, %v494, %v492
      %v496 = vmul.f32 %v433, %v433
      %v497 = vmul.f32 %v434, %v434
      %v498 = vmul.f32 %v436, %v436
      %v499 = vmul.f32 %v437, %v437
      %v500 = vmul.f32 %v439, %v439
      %v501 = vmul.f32 %v440, %v440
      %v502 = vadd.f32 %v496, %v497
      %503 = vadd.xlane.f32.xlu0 %v502
      %v504 = vpop.xlane.xlu0 %503
      %v505 = vadd.f32 %v498, %v499
      %506 = vadd.xlane.f32.xlu0 %v505
      %v507 = vpop.xlane.xlu0 %506
      %v508 = vsel %vm100, %v500, 0.0
      %v509 = vsel %vm100, %v501, 0.0
      %v510 = vadd.f32 %v508, %v509
      %511 = vadd.xlane.f32.xlu0 %v510
      %v512 = vpop.xlane.xlu0 %511
      %v513 = vrsqrt.pop %v504
      %v514 = vmul.f32 %v504, %v513
      %vm515 = vcmp.eq.f32.partialorder %v504, inf
      %v516 = vsel %vm515, %v504, %v514
      %vm517 = vcmp.eq.f32.partialorder %v504, 0.0
      %v518 = vand.u32 %v504, 2147483648
      %v519 = vsel %vm517, %v518, %v516
      %v520 = vrsqrt.pop %v507
      %v521 = vmul.f32 %v507, %v520
      %vm522 = vcmp.eq.f32.partialorder %v507, inf
      %v523 = vsel %vm522, %v507, %v521
      %vm524 = vcmp.eq.f32.partialorder %v507, 0.0
      %v525 = vand.u32 %v507, 2147483648
      %v526 = vsel %vm524, %v525, %v523
      %v527 = vrsqrt.pop %v512
      %v528 = vmul.f32 %v512, %v527
      %vm529 = vcmp.eq.f32.partialorder %v512, inf
      %v530 = vsel %vm529, %v512, %v528
      %vm531 = vcmp.eq.f32.partialorder %v512, 0.0
      %v532 = vand.u32 %v512, 2147483648
      %v533 = vsel %vm531, %v532, %v530
      %v534 = vmul.f32 %v481, %v519
      %v535 = vmul.f32 %v488, %v526
      %v536 = vmul.f32 %v495, %v533
      %v537 = vmax.f32 %v534, 1e-08
      %v538 = vmax.f32 %v535, 1e-08
      %v539 = vmax.f32 %v536, 1e-08
      %v540 = vrcp.pop %v537
      %v541 = vmul.f32 %v449, %v540
      %v542 = vrcp.pop %v538
      %v543 = vmul.f32 %v452, %v542
      %v544 = vrcp.pop %v539
      %v545 = vmul.f32 %v457, %v544
      %v546 = vmul.f32 %v396, %v541
      %v547 = vmul.f32 %v397, %v541
      %v548 = vmul.f32 %v398, %v543
      %v549 = vmul.f32 %v399, %v543
      %v550 = vmul.f32 %v400, %v545
      %v551 = vmul.f32 %v401, %v545
      %v552 = vsub.f32 1.0, %v541
      %v553 = vsub.f32 1.0, %v543
      %v554 = vsub.f32 1.0, %v545
      %v555 = vmul.f32 %v433, %v552
      %v556 = vmul.f32 %v434, %v552
      %v557 = vmul.f32 %v436, %v553
      %v558 = vmul.f32 %v437, %v553
      %v559 = vmul.f32 %v439, %v554
      %v560 = vmul.f32 %v440, %v554
      %v561 = vadd.f32 %v546, %v555
      %v562 = vadd.f32 %v547, %v556
      %v563 = vadd.f32 %v548, %v557
      %v564 = vadd.f32 %v549, %v558
      %v565 = vadd.f32 %v550, %v559
      %v566 = vadd.f32 %v551, %v560
      %v567 = vsel %vm405, 1, 0
      %v568 = vsel %vm406, 1, 0
      %v569 = vsel %vm407, 1, 0
      %570 = vset.pattern.permute.xlu0 0
      %571 = vperm.xlu0 %570, %v567
      %v572 = vpop.permute.xlu0 %571
      %573 = vset.pattern.permute.xlu0 0
      %574 = vperm.xlu0 %573, %v568
      %v575 = vpop.permute.xlu0 %574
      %576 = vset.pattern.permute.xlu0 0
      %577 = vperm.xlu0 %576, %v569
      %v578 = vpop.permute.xlu0 %577
      %vm579 = vcmp.eq.s32.totalorder %v572, 1
      %vm580 = vcmp.eq.s32.totalorder %v575, 1
      %vm581 = vcmp.eq.s32.totalorder %v578, 1
      %v582 = vsel %vm579, %v561, %v396
      %v583 = vsel %vm579, %v562, %v397
      %v584 = vsel %vm580, %v563, %v398
      %v585 = vsel %vm580, %v564, %v399
      %v586 = vsel %vm581, %v565, %v400
      %v587 = vsel %vm581, %v566, %v401
      %588 = vst [vmem:[#allocation9] sm:$0xff] %v582
      %589 = vst [vmem:[#allocation9 + $0x8] sm:$0xff] %v583
      %590 = vst [vmem:[#allocation9 + $0x10] sm:$0xff] %v584
      %591 = vst [vmem:[#allocation9 + $0x18] sm:$0xff] %v585
      %592 = vst [vmem:[#allocation9 + $0x20] sm:$0x1f] %v586
      %593 = vst [vmem:[#allocation9 + $0x28] sm:$0x1f] %v587
    $region33: #{tpu_custom_call.1} parent=1 // pred_fallthru
      _
    // Predicated region
    $region34: #{tpu_custom_call.1} parent=1 // pred_check
      _
    $region35: #{tpu_custom_call.1} parent=1 // pred_check_branch
      %595 = sbr.rel (0) target = $region37
    $region36: #{tpu_custom_call.1} parent=1 // pred_region
      %s597 = ssub.s32 768, 768
      %598 = vsyncadd [#allocation6], %s597
      %s599 = sshll.u32 [#allocation9], 4
      %s600 = int_to_ptr.vmem [resolvable:$true] %s599
      %605 = dma.vmem_to_hbm [thread:$0]  %s600, 768, %s3, [#allocation6], 256, 256, 16
    $region37: #{tpu_custom_call.1} parent=1 // pred_fallthru
      _
    // Predicated region
    $region38: #{tpu_custom_call.1} parent=1 // pred_check
      _
    $region39: #{tpu_custom_call.1} parent=1 // pred_check_branch
      %607 = sbr.rel (0) target = $region41
    $region40: #{tpu_custom_call.1} parent=1 // pred_region
      %s609 = ssub.s32 16, 16
      %610 = vsyncadd [#allocation11], %s609
      %s612 = sshll.u32 [#allocation10], 4
      %s613 = int_to_ptr.vmem [resolvable:$true] %s612
      %615 = dma.vmem_to_hbm [thread:$0]  %s613, 16, %s4, [#allocation11]
    $region41: #{tpu_custom_call.1} parent=1 // pred_fallthru
      _
    // Predicated region
    $region42: #{tpu_custom_call.1} parent=1 // pred_check
      _
    $region43: #{tpu_custom_call.1} parent=1 // pred_check_branch
      %617 = sbr.rel (0) target = $region45
    $region44: #{tpu_custom_call.1} parent=1 // pred_region
      %618 = dma.done [#allocation6], 768
    $region45: #{tpu_custom_call.1} parent=1 // pred_fallthru
      _
    // Predicated region
    $region46: #{tpu_custom_call.1} parent=1 // pred_check
      _
    $region47: #{tpu_custom_call.1} parent=1 // pred_check_branch
      %620 = sbr.rel (0) target = $region49
    $region48: #{tpu_custom_call.1} parent=1 // pred_region
      %621 = dma.done [#allocation11], 16
    $region49: #{tpu_custom_call.1} parent=1 // pred_fallthru
      _
    %622 = vsyncpa [#allocation5], 1
    %623 = vsyncpa [#allocation8], 1
    %624 = vsyncpa [#allocation6], 1
    %625 = vsyncpa [#allocation11], 1

</llo_original>
